<compile_context>
chip_gen: v7x
topology: tpu7x:2x2x1
jax: 0.10.0
libtpu: 0.0.40
codegen_flags: <defaults>
</compile_context>

<pallas_src>
import math

import jax
import jax.numpy as jnp
from jax.experimental import pallas as pl
from jax.experimental.pallas import tpu as pltpu


def _copy_kernel(x_ref, o_ref):
    # Identity copy of the current tile (the entire "work" of a view/reshape).
    o_ref[...] = x_ref[...]


def _resolve_shape(total, shape):
    """Resolve a single -1 entry like torch.Tensor.view does."""
    shape = list(shape)
    if shape.count(-1) > 1:
        raise ValueError("only one dimension can be -1")
    if -1 in shape:
        known = 1
        for s in shape:
            if s != -1:
                known *= s
        if known == 0 or total % known != 0:
            raise ValueError(f"cannot view {total} elements as shape {shape}")
        shape[shape.index(-1)] = total // known
    if math.prod(shape) != total:
        raise ValueError(f"shape {shape} is invalid for input of size {total}")
    return tuple(shape)


# Lane-dense last dim: large multiple of 128 lanes -> unmasked full-width vst
# and fewer, longer DMA descriptors per tile.
_LANE_WIDTH = 1024
# ~4 MiB per tile buffer (power-of-two row count >= 32 for all dtypes, so
# bf16/int8 sublane packing granularity is also satisfied).
_TILE_BYTES = 4 << 20


def _tiled_copy(slab):
    """Identity-copy a lane-dense 2D slab through VMEM with multi-MiB tiles."""
    rows, lanes = slab.shape
    itemsize = jnp.dtype(slab.dtype).itemsize

    target_rows = max(8, _TILE_BYTES // (lanes * itemsize))  # 1024 f32, 2048 bf16, ...
    if rows <= target_rows:
        # Single block covering the whole slab (block == full array extent is
        # always a legal block shape, regardless of (8,128) divisibility).
        block_rows = rows
    else:
        # target_rows is a power of two >= 8; a ragged final block (rows not a
        # multiple of block_rows) is handled by Pallas edge masking.
        block_rows = target_rows

    grid = (pl.cdiv(rows, block_rows),)
    return pl.pallas_call(
        _copy_kernel,
        out_shape=jax.ShapeDtypeStruct((rows, lanes), slab.dtype),
        grid_spec=pltpu.PrefetchScalarGridSpec(
            num_scalar_prefetch=0,
            grid=grid,
            in_specs=[pl.BlockSpec((block_rows, lanes), lambda i: (i, 0))],
            out_specs=pl.BlockSpec((block_rows, lanes), lambda i: (i, 0)),
        ),
        compiler_params=pltpu.CompilerParams(
            # Single "parallel" axis -> sharded across both TensorCores on
            # v7x; no effect (and no cost) on single-TC v5e/v6e.
            dimension_semantics=("parallel",),
        ),
        cost_estimate=pl.CostEstimate(
            flops=0,
            transcendentals=0,
            bytes_accessed=2 * rows * lanes * itemsize,
        ),
    )(slab)


def pallas_reshape(x, *target_shape):
    """Equivalent of Reshape(*target_shape)(x) == x.view(target_shape)."""
    total = x.size
    out_shape = _resolve_shape(total, target_shape)

    if total == 0:
        return jnp.reshape(x, out_shape)

    # Row-major (C-contiguous) element stream -- same ordering torch .view
    # assumes for contiguous tensors.
    flat = jnp.reshape(x, (-1,))

    if total % _LANE_WIDTH == 0:
        rows = total // _LANE_WIDTH
        slab = jnp.reshape(flat, (rows, _LANE_WIDTH))
        flat_out = jnp.reshape(_tiled_copy(slab), (-1,))
    else:
        # Grid-based fallback for sizes not divisible by the lane width: pad
        # the tail (at most 8*_LANE_WIDTH - 1 elements), run the same tiled
        # copy, then drop the padding.  VMEM usage stays at one tile per
        # buffer, unlike the old single full-extent (1, total) block.
        pad_to = 8 * _LANE_WIDTH
        padded_total = ((total + pad_to - 1) // pad_to) * pad_to
        flat_padded = jnp.pad(flat, (0, padded_total - total))
        rows = padded_total // _LANE_WIDTH
        slab = jnp.reshape(flat_padded, (rows, _LANE_WIDTH))
        flat_out = jnp.reshape(_tiled_copy(slab), (-1,))[:total]

    # Zero-cost metadata reinterpretation (the actual "view").
    return jnp.reshape(flat_out, out_shape)


class ReshapePallas:
    """Mirror of the PyTorch Reshape(nn.Module)."""

    def __init__(self, *args):
        self.shape = args

    def __call__(self, x):
        return pallas_reshape(x, *self.shape)


if __name__ == "__main__":
    key = jax.random.PRNGKey(0)
    # Small NCHW-style input, consistent with typical usage of Reshape(B, -1).
    x = jax.random.normal(key, (2, 4, 16, 16), dtype=jnp.float32)

    module = ReshapePallas(2, -1)  # same as torch: x.view(2, -1)
    out = jax.block_until_ready(module(x))

    ref = jnp.reshape(x, (2, -1))
    assert out.shape == (2, 4 * 16 * 16), out.shape
    assert out.dtype == x.dtype
    assert bool(jnp.array_equal(out, ref))

    # Also exercise the non-lane-aligned (padded) path on a small odd size.
    y = jax.random.normal(jax.random.PRNGKey(1), (3, 5, 7), dtype=jnp.float32)
    out2 = jax.block_until_ready(ReshapePallas(-1)(y))
    assert out2.shape == (3 * 5 * 7,)
    assert bool(jnp.array_equal(out2, jnp.reshape(y, (-1,))))

    print("KERNEL_OK")
</pallas_src>

<mosaic_0001>
module attributes {stable_mosaic.version = 11 : i64} {
  func.func @_copy_kernel(%arg0: i32, %arg1: memref<2x1024xf32, #tpu.memory_space<vmem>>, %arg2: memref<2x1024xf32, #tpu.memory_space<vmem>>) attributes {dimension_semantics = [#tpu.dimension_semantics<parallel>], iteration_bounds = array<i64: 1>, scalar_prefetch = 0 : i64, scratch_operands = 0 : i64, tpu.core_type = #tpu.core_type<tc>, window_params = [{transform_indices = @transform_0, window_bounds = array<i64: 2, 1024>}, {transform_indices = @transform_1, window_bounds = array<i64: 2, 1024>}]} {
    %c0 = arith.constant 0 : index
    %c0_0 = arith.constant 0 : index
    %0 = vector.load %arg1[%c0, %c0_0] : memref<2x1024xf32, #tpu.memory_space<vmem>>, vector<2x1024xf32>
    %c0_1 = arith.constant 0 : index
    %c0_2 = arith.constant 0 : index
    %1 = vector.load %arg2[%c0_1, %c0_2] : memref<2x1024xf32, #tpu.memory_space<vmem>>, vector<2x1024xf32>
    tpu.vector_store %arg2[%c0_1, %c0_2], %0 {strides = array<i32>} : memref<2x1024xf32, #tpu.memory_space<vmem>>, vector<2x1024xf32>,
    return
  }
  func.func @transform_0(%arg0: i32) -> (i32, i32) {
    %c0_i32 = arith.constant 0 : i32
    %c0_i32_0 = arith.constant 0 : i32
    return %arg0, %c0_i32 : i32, i32
  }
  func.func @transform_1(%arg0: i32) -> (i32, i32) {
    %c0_i32 = arith.constant 0 : i32
    %c0_i32_0 = arith.constant 0 : i32
    return %arg0, %c0_i32 : i32, i32
  }
}

</mosaic_0001>

<llo_original>
// kernel: tpu_custom_call.1
$region0: #{tpu_custom_call.1}
  #allocation0 [shape = 'u32[]', space=smem, size = 0x4, offset = 0x4, fixed_abs, tag = 'smem constant byte address 0x4 - core index']
  #allocation1 [shape = 'u32[144,128]{1,0:T(1,128)}', space=vmem, size = 0x12000, scoped, tag = 'internal scratch']
  %s0 = inlined_call_operand.hbm [shape: f32[2,1024], index: 0, kind: input, shape index: {}]
  %s1 = inlined_call_operand.hbm [shape: f32[2,1024], index: 1, kind: output, shape index: {}]
  %s2 = sld [smem:[#allocation0]]
  $region18: #{tpu_custom_call.1} parent=0
    _
  %s4 = ssub.s32 1, %s2
  %s5 = scalar_select 0, %s4, %s2
  $region1: #{tpu_custom_call.1} parent=0
    #allocation2 [shape = 'u8[8192]{0}', space=vmem, size = 0x2000, scoped, tag = 'input window, operand 0, single buffered']
    #allocation3 [shape = 's32[1]{0}', space=sflag, size = 0x4, scoped, tag = 'scoped memory for tpu_custom_call.1']
    #allocation4 [shape = 's32[1]{0}', space=sflag, size = 0x4, scoped, tag = 'scoped memory for tpu_custom_call.1']
    #allocation5 [shape = 'u8[8192]{0}', space=vmem, size = 0x2000, scoped, tag = 'output window, operand 0, single buffered']
    %6 = vsyncpa [#allocation3], 0
    %7 = vsyncpa [#allocation4], 0
    // Predicated region
    $region2: #{tpu_custom_call.1} parent=1 // pred_check
      _
    $region3: #{tpu_custom_call.1} parent=1 // pred_check_branch
      %9 = sbr.rel (0) target = $region5
    $region4: #{tpu_custom_call.1} parent=1 // pred_region
      %s11 = ssub.s32 256, 256
      %12 = vsyncadd [#allocation3], %s11
      %s14 = sshll.u32 [#allocation2], 4
      %s15 = int_to_ptr.vmem [resolvable:$true] %s14
      %17 = dma.hbm_to_vmem [thread:$0]  %s0, 256, %s15, [#allocation3]
    $region5: #{tpu_custom_call.1} parent=1 // pred_fallthru
      _
    // Predicated region
    $region6: #{tpu_custom_call.1} parent=1 // pred_check
      _
    $region7: #{tpu_custom_call.1} parent=1 // pred_check_branch
      %19 = sbr.rel (0) target = $region9
    $region8: #{tpu_custom_call.1} parent=1 // pred_region
      %20 = dma.done [#allocation3], 256
    $region9: #{tpu_custom_call.1} parent=1 // pred_fallthru
      _
    %v21 = vld [vmem:[#allocation2] sm:$0xff]
    %v22 = vld [vmem:[#allocation2 + $0x8] sm:$0xff]
    %23 = vst [vmem:[#allocation5] sm:$0xff] %v21
    %24 = vst [vmem:[#allocation5 + $0x8] sm:$0xff] %v22
    // Predicated region
    $region10: #{tpu_custom_call.1} parent=1 // pred_check
      _
    $region11: #{tpu_custom_call.1} parent=1 // pred_check_branch
      %26 = sbr.rel (0) target = $region13
    $region12: #{tpu_custom_call.1} parent=1 // pred_region
      %s28 = ssub.s32 256, 256
      %29 = vsyncadd [#allocation4], %s28
      %s31 = sshll.u32 [#allocation5], 4
      %s32 = int_to_ptr.vmem [resolvable:$true] %s31
      %34 = dma.vmem_to_hbm [thread:$0]  %s32, 256, %s1, [#allocation4]
    $region13: #{tpu_custom_call.1} parent=1 // pred_fallthru
      _
    // Predicated region
    $region14: #{tpu_custom_call.1} parent=1 // pred_check
      _
    $region15: #{tpu_custom_call.1} parent=1 // pred_check_branch
      %36 = sbr.rel (0) target = $region17
    $region16: #{tpu_custom_call.1} parent=1 // pred_region
      %37 = dma.done [#allocation4], 256
    $region17: #{tpu_custom_call.1} parent=1 // pred_fallthru
      _
    %38 = vsyncpa [#allocation3], 1
    %39 = vsyncpa [#allocation4], 1

</llo_original>
